<compile_context>
chip_gen: v7x
topology: tpu7x:2x2x1
jax: 0.10.0
libtpu: 0.0.40
codegen_flags: <defaults>
</compile_context>

<pallas_src>
import jax
import jax.numpy as jnp
from jax.experimental import pallas as pl
from jax.experimental.pallas import tpu as pltpu


# -----------------------------------------------------------------------------
# Zero-copy pass-through: the output aliases the input buffer; nothing is moved.
# -----------------------------------------------------------------------------
def _alias_passthrough_kernel(x_ref, o_ref):
    del x_ref  # output aliases the input buffer; there is nothing to move
    # Mark the aliased output as read+written so the (otherwise empty) kernel
    # keeps the buffer live/ordered.  Generates no data movement.
    pltpu.touch(o_ref)


def _identity_alias(x: jax.Array) -> jax.Array:
    return pl.pallas_call(
        _alias_passthrough_kernel,
        out_shape=jax.ShapeDtypeStruct(x.shape, x.dtype),
        in_specs=[pl.BlockSpec(memory_space=pl.ANY)],
        out_specs=pl.BlockSpec(memory_space=pl.ANY),
        input_output_aliases={0: 0},  # alias/donate: 0 HBM bytes moved by the kernel
        cost_estimate=pl.CostEstimate(flops=0, transcendentals=0, bytes_accessed=0),
    )(x)


# -----------------------------------------------------------------------------
# Materialized copy (fresh buffer): direct HBM->HBM DMA, chunked along axis 0 so
# several DMA engines are in flight.  No VMEM staging, no tile-size tuning.
# -----------------------------------------------------------------------------
_MAX_DMA_CHUNKS = 4


def _chunk_bounds(dim0: int, max_chunks: int, align: int):
    """Static (start, size) chunks covering [0, dim0); starts are multiples of align."""
    nc = max(1, min(max_chunks, -(-dim0 // align)))
    per = -(-dim0 // nc)             # ceil(dim0 / nc)
    per = -(-per // align) * align   # round chunk size up to the alignment
    bounds, start = [], 0
    while start < dim0:
        size = min(per, dim0 - start)
        bounds.append((start, size))
        start += size
    return bounds


def _make_copy_kernel(bounds):
    def kernel(x_ref, o_ref, sems):
        copies = []
        for idx, (start, size) in enumerate(bounds):  # static unroll, <= 4 DMAs
            cp = pltpu.make_async_copy(
                x_ref.at[pl.ds(start, size)],
                o_ref.at[pl.ds(start, size)],
                sems.at[idx],
            )
            cp.start()
            copies.append(cp)
        for cp in copies:
            cp.wait()
    return kernel


def _identity_copy(x: jax.Array) -> jax.Array:
    orig_shape = x.shape
    if x.ndim == 0:
        x2 = x.reshape(1, 1)
    elif x.ndim == 1:
        x2 = x.reshape(1, x.shape[0])
    elif x.ndim == 2:
        x2 = x
    else:
        # Collapse leading dims only; the two minor (physically (8,128)-tiled)
        # dims are untouched, so this reshape is a free bitcast (no relayout copy).
        x2 = x.reshape((-1,) + x.shape[-2:])

    # Align chunk starts to the sublane axis when axis 0 is the second-minor dim.
    align = 8 if x2.ndim == 2 else 1
    bounds = _chunk_bounds(x2.shape[0], _MAX_DMA_CHUNKS, align)
    nbytes = x.size * jnp.dtype(x.dtype).itemsize
    # Note: if the collapsed leading dim is 1 the copy runs as a single DMA,
    # which is still correct and close to HBM roofline for large arrays.

    out2 = pl.pallas_call(
        _make_copy_kernel(bounds),
        out_shape=jax.ShapeDtypeStruct(x2.shape, x.dtype),
        in_specs=[pl.BlockSpec(memory_space=pl.ANY)],
        out_specs=pl.BlockSpec(memory_space=pl.ANY),
        scratch_shapes=[pltpu.SemaphoreType.DMA((len(bounds),))],
        cost_estimate=pl.CostEstimate(flops=0, transcendentals=0,
                                      bytes_accessed=2 * nbytes),
    )(x2)
    return out2.reshape(orig_shape) if out2.shape != orig_shape else out2


def identity(x: jax.Array, *, materialize: bool = False) -> jax.Array:
    """Identity.forward(x) -> x.

    Default: zero-copy Pallas shell whose output aliases the input buffer
    (no HBM traffic when the surrounding jit can alias/donate x).
    materialize=True: exact copy into a fresh buffer via chunked HBM->HBM DMA.
    """
    if x.size == 0:
        return x
    if not materialize:
        try:
            return _identity_alias(x)
        except Exception:
            # Defensive: if the aliased zero-copy shell ever fails to lower on a
            # given jax/libtpu combo, fall back to the exact DMA copy below.
            pass
    return _identity_copy(x)


if __name__ == "__main__":
    key = jax.random.PRNGKey(0)

    # NCHW input consistent with the CNN module: batch=2, channels=4, spatial=16x16.
    x = jax.random.normal(key, (2, 4, 16, 16), dtype=jnp.float32)

    # Default zero-copy aliased pass-through.
    y = jax.block_until_ready(identity(x))
    assert y.shape == x.shape and y.dtype == x.dtype
    assert bool(jnp.all(y == x))

    # Materialized-copy path (chunked HBM->HBM DMA, 3-D collapsed layout).
    yc = jax.block_until_ready(identity(x, materialize=True))
    assert yc.shape == x.shape and yc.dtype == x.dtype
    assert bool(jnp.all(yc == x))

    # Sub-32-bit dtype coverage.
    xb = jax.random.normal(key, (2, 4, 16, 16), dtype=jnp.bfloat16)
    yb = jax.block_until_ready(identity(xb))
    assert yb.dtype == xb.dtype and bool(jnp.all(yb == xb))

    # Odd, non-128-divisible shape through the DMA copy path.
    xo = jax.random.normal(key, (3, 5, 7), dtype=jnp.float32)
    yo = jax.block_until_ready(identity(xo, materialize=True))
    assert yo.shape == xo.shape and bool(jnp.all(yo == xo))

    print("KERNEL_OK")
</pallas_src>

<mosaic_0001>
module attributes {stable_mosaic.version = 11 : i64} {
  func.func @_alias_passthrough_kernel(%arg0: memref<2x4x16x16xf32, #tpu.memory_space<any>>, %arg1: memref<2x4x16x16xf32, #tpu.memory_space<any>>) attributes {dimension_semantics = [], scalar_prefetch = 0 : i64, scratch_operands = 0 : i64, tpu.core_type = #tpu.core_type<tc>} {
    return
  }
}

module attributes {stable_mosaic.version = 11 : i64} {
  func.func @kernel(%arg0: memref<8x16x16xf32, #tpu.memory_space<any>>, %arg1: memref<8x16x16xf32, #tpu.memory_space<any>>, %arg2: memref<4x!tpu.dma_semaphore, #tpu.memory_space<semaphore_mem>>) attributes {dimension_semantics = [], scalar_prefetch = 0 : i64, scratch_operands = 1 : i64, tpu.core_type = #tpu.core_type<tc>} {
    %c0_i32 = arith.constant 0 : i32
    %c0_i32_0 = arith.constant 0 : i32
    %c0_i32_1 = arith.constant 0 : i32
    %c0_i32_2 = arith.constant 0 : i32
    %0 = tpu.memref_slice %arg0[%c0_i32_0, %c0_i32_1, %c0_i32_2] : memref<8x16x16xf32, #tpu.memory_space<any>> -> memref<2x16x16xf32, #tpu.memory_space<any>>
    %c0_i32_3 = arith.constant 0 : i32
    %c0_i32_4 = arith.constant 0 : i32
    %c0_i32_5 = arith.constant 0 : i32
    %1 = tpu.memref_slice %arg1[%c0_i32_3, %c0_i32_4, %c0_i32_5] : memref<8x16x16xf32, #tpu.memory_space<any>> -> memref<2x16x16xf32, #tpu.memory_space<any>>
    %2 = tpu.memref_slice %arg2[%c0_i32] : memref<4x!tpu.dma_semaphore, #tpu.memory_space<semaphore_mem>> -> memref<1x!tpu.dma_semaphore, #tpu.memory_space<semaphore_mem>>
    %3 = tpu.memref_squeeze %2 : memref<1x!tpu.dma_semaphore, #tpu.memory_space<semaphore_mem>> -> memref<!tpu.dma_semaphore, #tpu.memory_space<semaphore_mem>>
    tpu.enqueue_dma source(%0 : memref<2x16x16xf32, #tpu.memory_space<any>>) target(%1 : memref<2x16x16xf32, #tpu.memory_space<any>>) target_semaphore(%3 : memref<!tpu.dma_semaphore, #tpu.memory_space<semaphore_mem>>)
    %c1_i32 = arith.constant 1 : i32
    %c2_i32 = arith.constant 2 : i32
    %c0_i32_6 = arith.constant 0 : i32
    %c0_i32_7 = arith.constant 0 : i32
    %4 = tpu.memref_slice %arg0[%c2_i32, %c0_i32_6, %c0_i32_7] : memref<8x16x16xf32, #tpu.memory_space<any>> -> memref<2x16x16xf32, #tpu.memory_space<any>>
    %c2_i32_8 = arith.constant 2 : i32
    %c0_i32_9 = arith.constant 0 : i32
    %c0_i32_10 = arith.constant 0 : i32
    %5 = tpu.memref_slice %arg1[%c2_i32_8, %c0_i32_9, %c0_i32_10] : memref<8x16x16xf32, #tpu.memory_space<any>> -> memref<2x16x16xf32, #tpu.memory_space<any>>
    %6 = tpu.memref_slice %arg2[%c1_i32] : memref<4x!tpu.dma_semaphore, #tpu.memory_space<semaphore_mem>> -> memref<1x!tpu.dma_semaphore, #tpu.memory_space<semaphore_mem>>
    %7 = tpu.memref_squeeze %6 : memref<1x!tpu.dma_semaphore, #tpu.memory_space<semaphore_mem>> -> memref<!tpu.dma_semaphore, #tpu.memory_space<semaphore_mem>>
    tpu.enqueue_dma source(%4 : memref<2x16x16xf32, #tpu.memory_space<any>>) target(%5 : memref<2x16x16xf32, #tpu.memory_space<any>>) target_semaphore(%7 : memref<!tpu.dma_semaphore, #tpu.memory_space<semaphore_mem>>)
    %c2_i32_11 = arith.constant 2 : i32
    %c4_i32 = arith.constant 4 : i32
    %c0_i32_12 = arith.constant 0 : i32
    %c0_i32_13 = arith.constant 0 : i32
    %8 = tpu.memref_slice %arg0[%c4_i32, %c0_i32_12, %c0_i32_13] : memref<8x16x16xf32, #tpu.memory_space<any>> -> memref<2x16x16xf32, #tpu.memory_space<any>>
    %c4_i32_14 = arith.constant 4 : i32
    %c0_i32_15 = arith.constant 0 : i32
    %c0_i32_16 = arith.constant 0 : i32
    %9 = tpu.memref_slice %arg1[%c4_i32_14, %c0_i32_15, %c0_i32_16] : memref<8x16x16xf32, #tpu.memory_space<any>> -> memref<2x16x16xf32, #tpu.memory_space<any>>
    %10 = tpu.memref_slice %arg2[%c2_i32_11] : memref<4x!tpu.dma_semaphore, #tpu.memory_space<semaphore_mem>> -> memref<1x!tpu.dma_semaphore, #tpu.memory_space<semaphore_mem>>
    %11 = tpu.memref_squeeze %10 : memref<1x!tpu.dma_semaphore, #tpu.memory_space<semaphore_mem>> -> memref<!tpu.dma_semaphore, #tpu.memory_space<semaphore_mem>>
    tpu.enqueue_dma source(%8 : memref<2x16x16xf32, #tpu.memory_space<any>>) target(%9 : memref<2x16x16xf32, #tpu.memory_space<any>>) target_semaphore(%11 : memref<!tpu.dma_semaphore, #tpu.memory_space<semaphore_mem>>)
    %c3_i32 = arith.constant 3 : i32
    %c6_i32 = arith.constant 6 : i32
    %c0_i32_17 = arith.constant 0 : i32
    %c0_i32_18 = arith.constant 0 : i32
    %12 = tpu.memref_slice %arg0[%c6_i32, %c0_i32_17, %c0_i32_18] : memref<8x16x16xf32, #tpu.memory_space<any>> -> memref<2x16x16xf32, #tpu.memory_space<any>>
    %c6_i32_19 = arith.constant 6 : i32
    %c0_i32_20 = arith.constant 0 : i32
    %c0_i32_21 = arith.constant 0 : i32
    %13 = tpu.memref_slice %arg1[%c6_i32_19, %c0_i32_20, %c0_i32_21] : memref<8x16x16xf32, #tpu.memory_space<any>> -> memref<2x16x16xf32, #tpu.memory_space<any>>
    %14 = tpu.memref_slice %arg2[%c3_i32] : memref<4x!tpu.dma_semaphore, #tpu.memory_space<semaphore_mem>> -> memref<1x!tpu.dma_semaphore, #tpu.memory_space<semaphore_mem>>
    %15 = tpu.memref_squeeze %14 : memref<1x!tpu.dma_semaphore, #tpu.memory_space<semaphore_mem>> -> memref<!tpu.dma_semaphore, #tpu.memory_space<semaphore_mem>>
    tpu.enqueue_dma source(%12 : memref<2x16x16xf32, #tpu.memory_space<any>>) target(%13 : memref<2x16x16xf32, #tpu.memory_space<any>>) target_semaphore(%15 : memref<!tpu.dma_semaphore, #tpu.memory_space<semaphore_mem>>)
    %c0_i32_22 = arith.constant 0 : i32
    %c0_i32_23 = arith.constant 0 : i32
    %c0_i32_24 = arith.constant 0 : i32
    %c0_i32_25 = arith.constant 0 : i32
    %16 = tpu.memref_slice %arg0[%c0_i32_23, %c0_i32_24, %c0_i32_25] : memref<8x16x16xf32, #tpu.memory_space<any>> -> memref<2x16x16xf32, #tpu.memory_space<any>>
    %c0_i32_26 = arith.constant 0 : i32
    %c0_i32_27 = arith.constant 0 : i32
    %c0_i32_28 = arith.constant 0 : i32
    %17 = tpu.memref_slice %arg1[%c0_i32_26, %c0_i32_27, %c0_i32_28] : memref<8x16x16xf32, #tpu.memory_space<any>> -> memref<2x16x16xf32, #tpu.memory_space<any>>
    %18 = tpu.memref_slice %arg2[%c0_i32_22] : memref<4x!tpu.dma_semaphore, #tpu.memory_space<semaphore_mem>> -> memref<1x!tpu.dma_semaphore, #tpu.memory_space<semaphore_mem>>
    %19 = tpu.memref_squeeze %18 : memref<1x!tpu.dma_semaphore, #tpu.memory_space<semaphore_mem>> -> memref<!tpu.dma_semaphore, #tpu.memory_space<semaphore_mem>>
    tpu.wait_dma2 semaphore(%19 : memref<!tpu.dma_semaphore, #tpu.memory_space<semaphore_mem>>) src(%16 : memref<2x16x16xf32, #tpu.memory_space<any>>) dst(%17 : memref<2x16x16xf32, #tpu.memory_space<any>>)
    %c1_i32_29 = arith.constant 1 : i32
    %c2_i32_30 = arith.constant 2 : i32
    %c0_i32_31 = arith.constant 0 : i32
    %c0_i32_32 = arith.constant 0 : i32
    %20 = tpu.memref_slice %arg0[%c2_i32_30, %c0_i32_31, %c0_i32_32] : memref<8x16x16xf32, #tpu.memory_space<any>> -> memref<2x16x16xf32, #tpu.memory_space<any>>
    %c2_i32_33 = arith.constant 2 : i32
    %c0_i32_34 = arith.constant 0 : i32
    %c0_i32_35 = arith.constant 0 : i32
    %21 = tpu.memref_slice %arg1[%c2_i32_33, %c0_i32_34, %c0_i32_35] : memref<8x16x16xf32, #tpu.memory_space<any>> -> memref<2x16x16xf32, #tpu.memory_space<any>>
    %22 = tpu.memref_slice %arg2[%c1_i32_29] : memref<4x!tpu.dma_semaphore, #tpu.memory_space<semaphore_mem>> -> memref<1x!tpu.dma_semaphore, #tpu.memory_space<semaphore_mem>>
    %23 = tpu.memref_squeeze %22 : memref<1x!tpu.dma_semaphore, #tpu.memory_space<semaphore_mem>> -> memref<!tpu.dma_semaphore, #tpu.memory_space<semaphore_mem>>
    tpu.wait_dma2 semaphore(%23 : memref<!tpu.dma_semaphore, #tpu.memory_space<semaphore_mem>>) src(%20 : memref<2x16x16xf32, #tpu.memory_space<any>>) dst(%21 : memref<2x16x16xf32, #tpu.memory_space<any>>)
    %c2_i32_36 = arith.constant 2 : i32
    %c4_i32_37 = arith.constant 4 : i32
    %c0_i32_38 = arith.constant 0 : i32
    %c0_i32_39 = arith.constant 0 : i32
    %24 = tpu.memref_slice %arg0[%c4_i32_37, %c0_i32_38, %c0_i32_39] : memref<8x16x16xf32, #tpu.memory_space<any>> -> memref<2x16x16xf32, #tpu.memory_space<any>>
    %c4_i32_40 = arith.constant 4 : i32
    %c0_i32_41 = arith.constant 0 : i32
    %c0_i32_42 = arith.constant 0 : i32
    %25 = tpu.memref_slice %arg1[%c4_i32_40, %c0_i32_41, %c0_i32_42] : memref<8x16x16xf32, #tpu.memory_space<any>> -> memref<2x16x16xf32, #tpu.memory_space<any>>
    %26 = tpu.memref_slice %arg2[%c2_i32_36] : memref<4x!tpu.dma_semaphore, #tpu.memory_space<semaphore_mem>> -> memref<1x!tpu.dma_semaphore, #tpu.memory_space<semaphore_mem>>
    %27 = tpu.memref_squeeze %26 : memref<1x!tpu.dma_semaphore, #tpu.memory_space<semaphore_mem>> -> memref<!tpu.dma_semaphore, #tpu.memory_space<semaphore_mem>>
    tpu.wait_dma2 semaphore(%27 : memref<!tpu.dma_semaphore, #tpu.memory_space<semaphore_mem>>) src(%24 : memref<2x16x16xf32, #tpu.memory_space<any>>) dst(%25 : memref<2x16x16xf32, #tpu.memory_space<any>>)
    %c3_i32_43 = arith.constant 3 : i32
    %c6_i32_44 = arith.constant 6 : i32
    %c0_i32_45 = arith.constant 0 : i32
    %c0_i32_46 = arith.constant 0 : i32
    %28 = tpu.memref_slice %arg0[%c6_i32_44, %c0_i32_45, %c0_i32_46] : memref<8x16x16xf32, #tpu.memory_space<any>> -> memref<2x16x16xf32, #tpu.memory_space<any>>
    %c6_i32_47 = arith.constant 6 : i32
    %c0_i32_48 = arith.constant 0 : i32
    %c0_i32_49 = arith.constant 0 : i32
    %29 = tpu.memref_slice %arg1[%c6_i32_47, %c0_i32_48, %c0_i32_49] : memref<8x16x16xf32, #tpu.memory_space<any>> -> memref<2x16x16xf32, #tpu.memory_space<any>>
    %30 = tpu.memref_slice %arg2[%c3_i32_43] : memref<4x!tpu.dma_semaphore, #tpu.memory_space<semaphore_mem>> -> memref<1x!tpu.dma_semaphore, #tpu.memory_space<semaphore_mem>>
    %31 = tpu.memref_squeeze %30 : memref<1x!tpu.dma_semaphore, #tpu.memory_space<semaphore_mem>> -> memref<!tpu.dma_semaphore, #tpu.memory_space<semaphore_mem>>
    tpu.wait_dma2 semaphore(%31 : memref<!tpu.dma_semaphore, #tpu.memory_space<semaphore_mem>>) src(%28 : memref<2x16x16xf32, #tpu.memory_space<any>>) dst(%29 : memref<2x16x16xf32, #tpu.memory_space<any>>)
    return
  }
}

</mosaic_0001>

<llo_original>
// kernel: tpu_custom_call.1
$region0: #{tpu_custom_call.1}
  #allocation0 [shape = 'u32[]', space=smem, size = 0x4, offset = 0x4, fixed_abs, tag = 'smem constant byte address 0x4 - core index']
  #allocation1 [shape = 'u32[144,128]{1,0:T(1,128)}', space=vmem, size = 0x12000, scoped, tag = 'internal scratch']
  %s0 = inlined_call_operand.hbm [shape: f32[2,4,16,16], index: 0, kind: input, shape index: {}, may-alias: {0,1}]
  %s1 = inlined_call_operand.hbm [shape: f32[2,4,16,16], index: 1, kind: output, shape index: {}, may-alias: {0,1}]
  %s2 = sld [smem:[#allocation0]]
  $region2: #{tpu_custom_call.1} parent=0
    _
  %s4 = ssub.s32 1, %s2
  %s5 = scalar_select 0, %s4, %s2

// kernel: tpu_custom_call.1
$region0: #{tpu_custom_call.1}
  #allocation0 [shape = 'u32[]', space=smem, size = 0x4, offset = 0x4, fixed_abs, tag = 'smem constant byte address 0x4 - core index']
  #allocation1 [shape = 'u32[144,128]{1,0:T(1,128)}', space=vmem, size = 0x12000, scoped, tag = 'internal scratch']
  #allocation2 [shape = 's32[4]{0}', space=sflag, size = 0x10, scoped, tag = 'scratch operand']
  #allocation3 [shape = 's32[]', space=sflag, size = 0x4, offset = 0, fixed_abs, tag = 'sflag constant byte address 0x0 - dummy sync flag']
  #allocation4 [shape = 'u32[0]{0}', space=smem, size = 0, offset = 0, fixed_abs, tag = 'smem constant byte address 0x0 - null']
  #allocation5 [shape = 's32[]', space=sflag, size = 0x4, offset = 0, fixed_abs, tag = 'sflag constant byte address 0x0 - dummy sync flag']
  #allocation6 [shape = 'u32[0]{0}', space=smem, size = 0, offset = 0, fixed_abs, tag = 'smem constant byte address 0x0 - null']
  #allocation7 [shape = 's32[]', space=sflag, size = 0x4, offset = 0, fixed_abs, tag = 'sflag constant byte address 0x0 - dummy sync flag']
  #allocation8 [shape = 'u32[0]{0}', space=smem, size = 0, offset = 0, fixed_abs, tag = 'smem constant byte address 0x0 - null']
  #allocation9 [shape = 's32[]', space=sflag, size = 0x4, offset = 0, fixed_abs, tag = 'sflag constant byte address 0x0 - dummy sync flag']
  #allocation10 [shape = 'u32[0]{0}', space=smem, size = 0, offset = 0, fixed_abs, tag = 'smem constant byte address 0x0 - null']
  %s0 = inlined_call_operand.hbm [shape: f32[8,16,16], index: 0, kind: input, shape index: {}]
  %s1 = inlined_call_operand.hbm [shape: f32[8,16,16], index: 1, kind: output, shape index: {}]
  %s2 = sld [smem:[#allocation0]]
  $region2: #{tpu_custom_call.1} parent=0
    _
  %s4 = ssub.s32 1, %s2
  %s5 = scalar_select 0, %s4, %s2
  %s7 = sshll.u32 1, 14
  %s8 = sxor.u32 4294967295, %s7
  %s11 = sshll.u32 3, 24
  %s12 = sxor.u32 4294967295, %s11
  %s13 = sand.u32 0, %s12
  %s15 = sor.u32 %s13, 0
  %18 = dma.general %s0, 512, %s1, [#allocation2], [#allocation3], [#allocation4], %s15, 0
  %s19 = scalar_lea.hbm %s0, 512
  %s20 = scalar_lea.hbm %s1, 512
  %s21 = scalar_lea.sflag [#allocation2], 1
  %s23 = sshll.u32 1, 14
  %s24 = sxor.u32 4294967295, %s23
  %s27 = sshll.u32 3, 24
  %s28 = sxor.u32 4294967295, %s27
  %s29 = sand.u32 0, %s28
  %s31 = sor.u32 %s29, 0
  %34 = dma.general %s19, 512, %s20, %s21, [#allocation5], [#allocation6], %s31, 0
  %s35 = scalar_lea.hbm %s0, 1024
  %s36 = scalar_lea.hbm %s1, 1024
  %s37 = scalar_lea.sflag [#allocation2], 2
  %s39 = sshll.u32 1, 14
  %s40 = sxor.u32 4294967295, %s39
  %s43 = sshll.u32 3, 24
  %s44 = sxor.u32 4294967295, %s43
  %s45 = sand.u32 0, %s44
  %s47 = sor.u32 %s45, 0
  %50 = dma.general %s35, 512, %s36, %s37, [#allocation7], [#allocation8], %s47, 0
  %s51 = scalar_lea.hbm %s0, 1536
  %s52 = scalar_lea.hbm %s1, 1536
  %s53 = scalar_lea.sflag [#allocation2], 3
  %s55 = sshll.u32 1, 14
  %s56 = sxor.u32 4294967295, %s55
  %s59 = sshll.u32 3, 24
  %s60 = sxor.u32 4294967295, %s59
  %s61 = sand.u32 0, %s60
  %s63 = sor.u32 %s61, 0
  %66 = dma.general %s51, 512, %s52, %s53, [#allocation9], [#allocation10], %s63, 0
  %s67 = smul.u32 2, 16
  %s68 = smul.u32 %s67, 1
  %s69 = sshll.u32 %s68, 4
  %70 = dma.done [#allocation2], %s69
  %s71 = sshll.u32 %s68, 4
  %72 = dma.done %s21, %s71
  %s73 = sshll.u32 %s68, 4
  %74 = dma.done %s37, %s73
  %s75 = sshll.u32 %s68, 4
  %76 = dma.done %s53, %s75
  %77 = vsyncmov [#allocation2]
  %s78 = vpop.sfrf %77
  %p79 = scmp.eq.s32.totalorder %s78, 0
  %p80 = pneg %p79
  %82 = shalt.err (%p80)
  %s83 = scalar_lea.sflag [#allocation2], 1
  %84 = vsyncmov %s83
  %s85 = vpop.sfrf %84
  %p86 = scmp.eq.s32.totalorder %s85, 0
  %p87 = pneg %p86
  %89 = shalt.err (%p87)
  %s90 = scalar_lea.sflag [#allocation2], 2
  %91 = vsyncmov %s90
  %s92 = vpop.sfrf %91
  %p93 = scmp.eq.s32.totalorder %s92, 0
  %p94 = pneg %p93
  %96 = shalt.err (%p94)
  %s97 = scalar_lea.sflag [#allocation2], 3
  %98 = vsyncmov %s97
  %s99 = vpop.sfrf %98
  %p100 = scmp.eq.s32.totalorder %s99, 0
  %p101 = pneg %p100
  %103 = shalt.err (%p101)

</llo_original>
